<compile_context>
chip_gen: v5e
topology: v5e:2x2
jax: 0.10.0
libtpu: 0.0.40
codegen_flags: <defaults>
</compile_context>

<pallas_src>
import jax
import jax.numpy as jnp
from jax import lax
from jax.experimental import pallas as pl
from jax.experimental.pallas import tpu as pltpu

_LANE = 128      # lane width (last dim)
_SUBLANE = 8     # sublane width (second-to-last dim)


def _round_up(v, m):
    return (v + m - 1) // m * m


def _cdiv(a, b):
    return -(-a // b)


def _detect_num_cores():
    """2-way megacore split only on v7x (2 TCs/chip); 1 on v5e/v6e/unknown."""
    try:
        kind = jax.devices()[0].device_kind.lower()
    except Exception:
        return 1
    return 2 if "v7" in kind else 1


def _global_sa_kernel(x_ref, w1_ref, b1_ref, w2_ref, b2_ref, batch_ref, out_ref):
    """One TILE_N-row tile of the fused MLP + segment-sum pooling."""
    # Resident (B_pad, F_pad) f32 partial-sum accumulator for this core:
    # zero it on the first step of the reduction ("arbitrary") axis.
    @pl.when(pl.program_id(1) == 0)
    def _():
        out_ref[...] = jnp.zeros_like(out_ref)

    # Layer 1: [x | pos] was already packed into x in HBM -> single bf16 dot
    # with f32 accumulation.  Biases / ReLU stay in f32.
    h = jnp.dot(x_ref[...], w1_ref[...], preferred_element_type=jnp.float32)
    h = jnp.maximum(h + b1_ref[...], 0.0)

    # Layer 2: bf16 inputs, f32 accumulation.
    f = jnp.dot(h.astype(jnp.bfloat16), w2_ref[...],
                preferred_element_type=jnp.float32)
    f = jnp.maximum(f + b2_ref[...], 0.0)                      # (TILE_N, F_pad)

    # Per-tile segment sum as a one-hot matmul on the MXU.  Padded points carry
    # an out-of-range graph id and therefore match no row.  The one-hot is
    # exactly 0/1 so bf16 is exact; accumulation stays f32.
    b_pad = out_ref.shape[0]
    tile_n = f.shape[0]
    gids = lax.broadcasted_iota(jnp.int32, (b_pad, tile_n), 0)
    onehot = (batch_ref[...] == gids).astype(jnp.bfloat16)     # (B_pad, TILE_N)
    out_ref[...] += jnp.dot(onehot, f.astype(jnp.bfloat16),
                            preferred_element_type=jnp.float32)


def global_sa_module(x, pos, batch, params, num_graphs, *, tile_n=2048,
                     num_cores=None):
    """GlobalSAModule forward.

    x: (N, C) float, pos: (N, 3) float, batch: (N,) int32 with ids in
    [0, num_graphs).  params = (w1, b1, w2, b2) of the Linear+ReLU, Linear+ReLU
    MLP applied to cat([x, pos], dim=1).
    Returns (pooled (num_graphs, F_out), zeros (num_graphs, 3), arange(num_graphs)).
    """
    w1, b1, w2, b2 = params
    n, c_in = x.shape
    p_dim = pos.shape[1]
    f_in = c_in + p_dim
    assert w1.shape[0] == f_in
    hidden = w1.shape[1]
    f_out = w2.shape[1]

    if num_cores is None:
        num_cores = _detect_num_cores()

    # ---- channel padding to full lanes, graph padding to full sublanes ----
    h_pad = _round_up(hidden, _LANE)
    f_pad = _round_up(f_out, _LANE)
    b_pad = _round_up(num_graphs, _SUBLANE)
    # TODO(synk): for num_graphs >> 128 tile the one-hot pooling over b_pad
    # (second resident-accumulator axis) instead of one skinny matmul.

    # Weights padded + cast to bf16 (MXU-native); biases stay f32 (VPU adds).
    w1p = (jnp.zeros((f_in, h_pad), jnp.float32)
           .at[:, :hidden].set(w1.astype(jnp.float32))).astype(jnp.bfloat16)
    b1p = jnp.zeros((1, h_pad), jnp.float32).at[0, :hidden].set(b1.astype(jnp.float32))
    w2p = (jnp.zeros((h_pad, f_pad), jnp.float32)
           .at[:hidden, :f_out].set(w2.astype(jnp.float32))).astype(jnp.bfloat16)
    b2p = jnp.zeros((1, f_pad), jnp.float32).at[0, :f_out].set(b2.astype(jnp.float32))

    # ---- point-axis tiling: N split over num_cores x tiles_per_core tiles ----
    tile = min(_round_up(tile_n, _LANE), _round_up(n, _LANE))
    tiles_per_core = _cdiv(_cdiv(n, tile), num_cores)
    total_tiles = num_cores * tiles_per_core
    # Rebalance: shrink the tile so real (non-padding) rows spread across all
    # tiles -> on v7x both TensorCores get real work instead of one core
    # processing an all-padding tile.
    tile = max(_LANE, _round_up(_cdiv(n, total_tiles), _LANE))
    n_pad = total_tiles * tile

    # pos folded into the padded x buffer (cols c_in..c_in+p_dim-1): the padded
    # copy is made anyway, so this costs nothing and collapses layer 1 into a
    # single K=f_in dot.  Stored in HBM as bf16.
    xp = (jnp.zeros((n_pad, f_in), jnp.float32)
          .at[:n, :c_in].set(x.astype(jnp.float32))
          .at[:n, c_in:].set(pos.astype(jnp.float32))).astype(jnp.bfloat16)
    # Padded points get an out-of-range graph id -> they contribute to nothing.
    batch_p = jnp.full((1, n_pad), b_pad, jnp.int32).at[0, :n].set(batch.astype(jnp.int32))

    # Advisory cost estimate (documents the roofline assumption).
    flops = 2 * n_pad * (f_in * h_pad + h_pad * f_pad) + 2 * b_pad * n_pad * f_pad
    bytes_accessed = (n_pad * f_in * 2 + n_pad * 4                    # xp, batch
                      + (f_in * h_pad + h_pad * f_pad) * 2            # weights (bf16)
                      + (h_pad + f_pad) * 4                           # biases (f32)
                      + num_cores * b_pad * f_pad * 4)                # partial sums
    cost = pl.CostEstimate(flops=flops, transcendentals=0,
                           bytes_accessed=bytes_accessed)

    partial = pl.pallas_call(
        _global_sa_kernel,
        out_shape=jax.ShapeDtypeStruct((num_cores, b_pad, f_pad), jnp.float32),
        grid=(num_cores, tiles_per_core),
        in_specs=[
            pl.BlockSpec((tile, f_in), lambda c, i: (c * tiles_per_core + i, 0)),
            pl.BlockSpec((f_in, h_pad), lambda c, i: (0, 0)),
            pl.BlockSpec((1, h_pad), lambda c, i: (0, 0)),
            pl.BlockSpec((h_pad, f_pad), lambda c, i: (0, 0)),
            pl.BlockSpec((1, f_pad), lambda c, i: (0, 0)),
            pl.BlockSpec((1, tile), lambda c, i: (0, c * tiles_per_core + i)),
        ],
        out_specs=pl.BlockSpec((None, b_pad, f_pad), lambda c, i: (c, 0, 0)),
        compiler_params=pltpu.CompilerParams(
            dimension_semantics=("parallel", "arbitrary"),
            vmem_limit_bytes=32 * 1024 * 1024,
        ),
        cost_estimate=cost,
    )(xp, w1p, b1p, w2p, b2p, batch_p)

    # Tiny XLA epilogue: combine per-core partial sums, divide by precomputed
    # counts (independent of features, so never recomputed per tile).
    counts = jnp.zeros((num_graphs,), jnp.float32).at[batch.astype(jnp.int32)].add(1.0)
    inv_counts = 1.0 / jnp.maximum(counts, 1.0)
    pooled = partial.sum(axis=0)[:num_graphs, :f_out] * inv_counts[:, None]

    pos_out = jnp.zeros((num_graphs, 3), dtype=pos.dtype)
    batch_out = jnp.arange(num_graphs, dtype=jnp.int32)
    return pooled, pos_out, batch_out


def _reference(x, pos, batch, params, num_graphs):
    w1, b1, w2, b2 = params
    xcat = jnp.concatenate([x, pos], axis=1).astype(jnp.float32)
    h = jnp.maximum(xcat @ w1 + b1, 0.0)
    f = jnp.maximum(h @ w2 + b2, 0.0)
    onehot = (batch[None, :] == jnp.arange(num_graphs)[:, None]).astype(jnp.float32)
    sums = onehot @ f
    counts = jnp.maximum(onehot.sum(axis=1, keepdims=True), 1.0)
    return sums / counts


if __name__ == "__main__":
    key = jax.random.PRNGKey(0)
    k1, k2, k3, k4, k5, k6 = jax.random.split(key, 6)

    # Small shapes consistent with the forward pass.
    N = 16            # total number of points across all graphs
    C_IN = 13         # point feature channels (cat with 3-d pos -> 16)
    HIDDEN = 32
    F_OUT = 64
    NUM_GRAPHS = 2    # number of graphs in the batch

    x = jax.random.normal(k1, (N, C_IN), dtype=jnp.float32)
    pos = jax.random.normal(k2, (N, 3), dtype=jnp.float32)
    batch = jnp.concatenate([
        jnp.zeros((N // 2,), dtype=jnp.int32),
        jnp.ones((N - N // 2,), dtype=jnp.int32),
    ])

    # Linear(C_IN+3, HIDDEN) -> ReLU -> Linear(HIDDEN, F_OUT) -> ReLU
    w1 = jax.random.normal(k3, (C_IN + 3, HIDDEN), dtype=jnp.float32) * 0.1
    b1 = jax.random.normal(k4, (HIDDEN,), dtype=jnp.float32) * 0.01
    w2 = jax.random.normal(k5, (HIDDEN, F_OUT), dtype=jnp.float32) * 0.1
    b2 = jax.random.normal(k6, (F_OUT,), dtype=jnp.float32) * 0.01
    params = (w1, b1, w2, b2)

    out_x, out_pos, out_batch = global_sa_module(x, pos, batch, params, NUM_GRAPHS)
    jax.block_until_ready((out_x, out_pos, out_batch))

    ref = _reference(x, pos, batch, params, NUM_GRAPHS)
    assert out_x.shape == (NUM_GRAPHS, F_OUT)
    assert out_pos.shape == (NUM_GRAPHS, 3)
    assert out_batch.shape == (NUM_GRAPHS,)
    # bf16 matmul inputs (f32 accumulation) -> slightly looser tolerance.
    assert jnp.allclose(out_x, ref, atol=2e-2, rtol=2e-2), (
        f"max abs err {jnp.max(jnp.abs(out_x - ref))}")
    assert bool(jnp.all(out_pos == 0.0))
    assert bool(jnp.all(out_batch == jnp.arange(NUM_GRAPHS)))

    print("KERNEL_OK")
</pallas_src>

<mosaic_0001>
module attributes {stable_mosaic.version = 11 : i64} {
  func.func @_global_sa_kernel(%arg0: i32, %arg1: i32, %arg2: memref<128x16xbf16, #tpu.memory_space<vmem>>, %arg3: memref<16x128xbf16, #tpu.memory_space<vmem>>, %arg4: memref<1x128xf32, #tpu.memory_space<vmem>>, %arg5: memref<128x128xbf16, #tpu.memory_space<vmem>>, %arg6: memref<1x128xf32, #tpu.memory_space<vmem>>, %arg7: memref<1x128xi32, #tpu.memory_space<vmem>>, %arg8: memref<1x8x128xf32, #tpu.memory_space<vmem>>) attributes {dimension_semantics = [#tpu.dimension_semantics<parallel>, #tpu.dimension_semantics<arbitrary>], iteration_bounds = array<i64: 1, 1>, scalar_prefetch = 0 : i64, scratch_operands = 0 : i64, tpu.core_type = #tpu.core_type<tc>, window_params = [{transform_indices = @transform_0, window_bounds = array<i64: 128, 16>}, {pipeline_mode = #tpu.pipeline_mode<synchronous>, transform_indices = @transform_1, window_bounds = array<i64: 16, 128>}, {pipeline_mode = #tpu.pipeline_mode<synchronous>, transform_indices = @transform_2, window_bounds = array<i64: 1, 128>}, {pipeline_mode = #tpu.pipeline_mode<synchronous>, transform_indices = @transform_3, window_bounds = array<i64: 128, 128>}, {pipeline_mode = #tpu.pipeline_mode<synchronous>, transform_indices = @transform_4, window_bounds = array<i64: 1, 128>}, {transform_indices = @transform_5, window_bounds = array<i64: 1, 128>}, {transform_indices = @transform_6, window_bounds = array<i64: 1, 8, 128>}]} {
    %c0_i32 = arith.constant 0 : i32
    %0 = arith.cmpi eq, %arg1, %c0_i32 : i32
    %1 = arith.extui %0 : i1 to i32
    %c0_i32_0 = arith.constant 0 : i32
    %2 = arith.cmpi ne, %1, %c0_i32_0 : i32
    scf.if %2 {
      %cst_22 = arith.constant 0.000000e+00 : f32
      %34 = vector.broadcast %cst_22 : f32 to vector<8x128xf32>
      %c0_23 = arith.constant 0 : index
      %c0_24 = arith.constant 0 : index
      %c0_25 = arith.constant 0 : index
      %35 = vector.load %arg8[%c0_23, %c0_24, %c0_25] : memref<1x8x128xf32, #tpu.memory_space<vmem>>, vector<1x8x128xf32>
      %36 = vector.shape_cast %35 : vector<1x8x128xf32> to vector<8x128xf32>
      %37 = vector.shape_cast %34 : vector<8x128xf32> to vector<1x8x128xf32>
      tpu.vector_store %arg8[%c0_23, %c0_24, %c0_25], %37 {strides = array<i32>} : memref<1x8x128xf32, #tpu.memory_space<vmem>>, vector<1x8x128xf32>,
    } else {
    }
    %c0 = arith.constant 0 : index
    %c0_1 = arith.constant 0 : index
    %3 = vector.load %arg2[%c0, %c0_1] : memref<128x16xbf16, #tpu.memory_space<vmem>>, vector<128x16xbf16>
    %c0_2 = arith.constant 0 : index
    %c0_3 = arith.constant 0 : index
    %4 = vector.load %arg3[%c0_2, %c0_3] : memref<16x128xbf16, #tpu.memory_space<vmem>>, vector<16x128xbf16>
    %cst = arith.constant dense<0.000000e+00> : vector<128x128xf32>
    %5 = tpu.matmul %3, %4, %cst {dimension_numbers = #tpu.dot_dimension_numbers<[1], [0], [0], [1], [0, 0, 1, 1], [], []>} : vector<128x16xbf16>, vector<16x128xbf16>, vector<128x128xf32> -> vector<128x128xf32>
    %c0_4 = arith.constant 0 : index
    %c0_5 = arith.constant 0 : index
    %6 = vector.load %arg4[%c0_4, %c0_5] : memref<1x128xf32, #tpu.memory_space<vmem>>, vector<1x128xf32>
    %7 = vector.broadcast %6 : vector<1x128xf32> to vector<128x128xf32>
    %8 = arith.addf %5, %7 : vector<128x128xf32>
    %cst_6 = arith.constant 0.000000e+00 : f32
    %9 = vector.broadcast %cst_6 : f32 to vector<128x128xf32>
    %10 = arith.maximumf %8, %9 : vector<128x128xf32>
    %11 = arith.truncf %10 : vector<128x128xf32> to vector<128x128xbf16>
    %c0_7 = arith.constant 0 : index
    %c0_8 = arith.constant 0 : index
    %12 = vector.load %arg5[%c0_7, %c0_8] : memref<128x128xbf16, #tpu.memory_space<vmem>>, vector<128x128xbf16>
    %cst_9 = arith.constant dense<0.000000e+00> : vector<128x128xf32>
    %13 = tpu.matmul %11, %12, %cst_9 {dimension_numbers = #tpu.dot_dimension_numbers<[1], [0], [0], [1], [0, 0, 1, 1], [], []>} : vector<128x128xbf16>, vector<128x128xbf16>, vector<128x128xf32> -> vector<128x128xf32>
    %c0_10 = arith.constant 0 : index
    %c0_11 = arith.constant 0 : index
    %14 = vector.load %arg6[%c0_10, %c0_11] : memref<1x128xf32, #tpu.memory_space<vmem>>, vector<1x128xf32>
    %15 = vector.broadcast %14 : vector<1x128xf32> to vector<128x128xf32>
    %16 = arith.addf %13, %15 : vector<128x128xf32>
    %cst_12 = arith.constant 0.000000e+00 : f32
    %17 = vector.broadcast %cst_12 : f32 to vector<128x128xf32>
    %18 = arith.maximumf %16, %17 : vector<128x128xf32>
    %19 = tpu.iota {dimensions = array<i32: 0>} : vector<8x128xi32>
    %c0_13 = arith.constant 0 : index
    %c0_14 = arith.constant 0 : index
    %20 = vector.load %arg7[%c0_13, %c0_14] : memref<1x128xi32, #tpu.memory_space<vmem>>, vector<1x128xi32>
    %21 = vector.broadcast %20 : vector<1x128xi32> to vector<8x128xi32>
    %22 = arith.cmpi eq, %21, %19 : vector<8x128xi32>
    %23 = arith.extui %22 : vector<8x128xi1> to vector<8x128xi32>
    %24 = arith.sitofp %23 : vector<8x128xi32> to vector<8x128xf32>
    %25 = arith.truncf %24 : vector<8x128xf32> to vector<8x128xbf16>
    %c0_15 = arith.constant 0 : index
    %c0_16 = arith.constant 0 : index
    %c0_17 = arith.constant 0 : index
    %26 = vector.load %arg8[%c0_15, %c0_16, %c0_17] : memref<1x8x128xf32, #tpu.memory_space<vmem>>, vector<1x8x128xf32>
    %27 = vector.shape_cast %26 : vector<1x8x128xf32> to vector<8x128xf32>
    %28 = arith.truncf %18 : vector<128x128xf32> to vector<128x128xbf16>
    %cst_18 = arith.constant dense<0.000000e+00> : vector<8x128xf32>
    %29 = tpu.matmul %25, %28, %cst_18 {dimension_numbers = #tpu.dot_dimension_numbers<[1], [0], [0], [1], [0, 0, 1, 1], [], []>} : vector<8x128xbf16>, vector<128x128xbf16>, vector<8x128xf32> -> vector<8x128xf32>
    %30 = arith.addf %27, %29 : vector<8x128xf32>
    %c0_19 = arith.constant 0 : index
    %c0_20 = arith.constant 0 : index
    %c0_21 = arith.constant 0 : index
    %31 = vector.load %arg8[%c0_19, %c0_20, %c0_21] : memref<1x8x128xf32, #tpu.memory_space<vmem>>, vector<1x8x128xf32>
    %32 = vector.shape_cast %31 : vector<1x8x128xf32> to vector<8x128xf32>
    %33 = vector.shape_cast %30 : vector<8x128xf32> to vector<1x8x128xf32>
    tpu.vector_store %arg8[%c0_19, %c0_20, %c0_21], %33 {strides = array<i32>} : memref<1x8x128xf32, #tpu.memory_space<vmem>>, vector<1x8x128xf32>,
    return
  }
  func.func @transform_0(%arg0: i32, %arg1: i32) -> (i32, i32) {
    %c1_i32 = arith.constant 1 : i32
    %0 = arith.muli %arg0, %c1_i32 : i32
    %1 = arith.addi %0, %arg1 : i32
    %c0_i32 = arith.constant 0 : i32
    %c0_i32_0 = arith.constant 0 : i32
    return %1, %c0_i32 : i32, i32
  }
  func.func @transform_1(%arg0: i32, %arg1: i32) -> (i32, i32) {
    %c0_i32 = arith.constant 0 : i32
    %c0_i32_0 = arith.constant 0 : i32
    %c0_i32_1 = arith.constant 0 : i32
    return %c0_i32, %c0_i32_0 : i32, i32
  }
  func.func @transform_2(%arg0: i32, %arg1: i32) -> (i32, i32) {
    %c0_i32 = arith.constant 0 : i32
    %c0_i32_0 = arith.constant 0 : i32
    %c0_i32_1 = arith.constant 0 : i32
    return %c0_i32, %c0_i32_0 : i32, i32
  }
  func.func @transform_3(%arg0: i32, %arg1: i32) -> (i32, i32) {
    %c0_i32 = arith.constant 0 : i32
    %c0_i32_0 = arith.constant 0 : i32
    %c0_i32_1 = arith.constant 0 : i32
    return %c0_i32, %c0_i32_0 : i32, i32
  }
  func.func @transform_4(%arg0: i32, %arg1: i32) -> (i32, i32) {
    %c0_i32 = arith.constant 0 : i32
    %c0_i32_0 = arith.constant 0 : i32
    %c0_i32_1 = arith.constant 0 : i32
    return %c0_i32, %c0_i32_0 : i32, i32
  }
  func.func @transform_5(%arg0: i32, %arg1: i32) -> (i32, i32) {
    %c1_i32 = arith.constant 1 : i32
    %0 = arith.muli %arg0, %c1_i32 : i32
    %1 = arith.addi %0, %arg1 : i32
    %c0_i32 = arith.constant 0 : i32
    %c0_i32_0 = arith.constant 0 : i32
    return %c0_i32, %1 : i32, i32
  }
  func.func @transform_6(%arg0: i32, %arg1: i32) -> (i32, i32, i32) {
    %c0_i32 = arith.constant 0 : i32
    %c0_i32_0 = arith.constant 0 : i32
    %c0_i32_1 = arith.constant 0 : i32
    return %arg0, %c0_i32, %c0_i32_0 : i32, i32, i32
  }
}

</mosaic_0001>

<llo_original>
// kernel: tpu_custom_call.1
$region0: #{tpu_custom_call.1}
  #allocation0 [shape = 'u32[]', space=smem, size = 0x4, offset = 0x4, fixed_abs, tag = 'smem constant byte address 0x4 - core index']
  #allocation1 [shape = 'u32[72,128]{1,0:T(1,128)}', space=vmem, size = 0x9000, scoped, tag = 'internal scratch']
  %s0 = inlined_call_operand.vmem [shape: bf16[128,16], index: 0, kind: input, shape index: {}]
  %s1 = inlined_call_operand.vmem [shape: bf16[16,128], index: 1, kind: input, shape index: {}]
  %s2 = inlined_call_operand.vmem [shape: f32[1,128], index: 2, kind: input, shape index: {}]
  %s3 = inlined_call_operand.vmem [shape: bf16[128,128], index: 3, kind: input, shape index: {}]
  %s4 = inlined_call_operand.vmem [shape: f32[1,128], index: 4, kind: input, shape index: {}]
  %s5 = inlined_call_operand.vmem [shape: s32[1,128], index: 5, kind: input, shape index: {}]
  %s6 = inlined_call_operand.hbm [shape: f32[1,8,128], index: 6, kind: output, shape index: {}]
  %s7 = sld [smem:[#allocation0]]
  $region38: #{tpu_custom_call.1} parent=0
    _
  %s9 = ssub.s32 1, %s7
  %s10 = scalar_select 0, %s9, %s7
  $region1: #{tpu_custom_call.1} parent=0
    #allocation2 [shape = 'u8[4096]{0}', space=vmem, size = 0x1000, scoped, tag = 'output window, operand 0, single buffered']
    #allocation3 [shape = 's32[1]{0}', space=sflag, size = 0x4, scoped, tag = 'scoped memory for tpu_custom_call.1']
    %11 = vsyncpa [#allocation3], 0
    // Predicated region
    $region2: #{tpu_custom_call.1} parent=1 // pred_check
      _
    $region3: #{tpu_custom_call.1} parent=1 // pred_check_branch
      %13 = sbr.rel (0) target = $region5
    $region4: #{tpu_custom_call.1} parent=1 // pred_region
      %s14 = sadd.s32 0, 0
      %s15 = smul.u32 16, %s14
      %p16 = scmp.lt.s32.totalorder %s15, 15
      %s17 = scalar_select %p16, %s15, 15
      %s18 = smul.addr %s17, 4
      %s19 = scalar_lea.vmem %s0, %s18
      %s20 = sadd.s32 0, 0
      %s21 = smul.u32 16, %s20
    $region5: #{tpu_custom_call.1} parent=1 // pred_fallthru
      _
    // Predicated region
    $region6: #{tpu_custom_call.1} parent=1 // pred_check
      _
    $region7: #{tpu_custom_call.1} parent=1 // pred_check_branch
      %23 = sbr.rel (0) target = $region9
    $region8: #{tpu_custom_call.1} parent=1 // pred_region
      _
    $region9: #{tpu_custom_call.1} parent=1 // pred_fallthru
      _
    // Predicated region
    $region10: #{tpu_custom_call.1} parent=1 // pred_check
      _
    $region11: #{tpu_custom_call.1} parent=1 // pred_check_branch
      %25 = sbr.rel (0) target = $region13
    $region12: #{tpu_custom_call.1} parent=1 // pred_region
      _
    $region13: #{tpu_custom_call.1} parent=1 // pred_fallthru
      _
    // Predicated region
    $region14: #{tpu_custom_call.1} parent=1 // pred_check
      _
    $region15: #{tpu_custom_call.1} parent=1 // pred_check_branch
      %27 = sbr.rel (0) target = $region17
    $region16: #{tpu_custom_call.1} parent=1 // pred_region
      _
    $region17: #{tpu_custom_call.1} parent=1 // pred_fallthru
      _
    // Predicated region
    $region18: #{tpu_custom_call.1} parent=1 // pred_check
      _
    $region19: #{tpu_custom_call.1} parent=1 // pred_check_branch
      %29 = sbr.rel (0) target = $region21
    $region20: #{tpu_custom_call.1} parent=1 // pred_region
      _
    $region21: #{tpu_custom_call.1} parent=1 // pred_fallthru
      _
    // Predicated region
    $region22: #{tpu_custom_call.1} parent=1 // pred_check
      _
    $region23: #{tpu_custom_call.1} parent=1 // pred_check_branch
      %31 = sbr.rel (0) target = $region25
    $region24: #{tpu_custom_call.1} parent=1 // pred_region
      %s32 = sadd.s32 0, 0
      %p33 = scmp.lt.s32.totalorder %s32, 0
      %s34 = scalar_select %p33, %s32, 0
      %s35 = scalar_lea.vmem %s5, %s34
      %s36 = sadd.s32 0, 0
    $region25: #{tpu_custom_call.1} parent=1 // pred_fallthru
      _
    %s37 = sadd.s32 0, 0
    %s38 = smul.u32 16, %s37
    %p39 = scmp.lt.s32.totalorder %s38, 15
    %s40 = scalar_select %p39, %s38, 15
    %s41 = smul.addr %s40, 4
    %s42 = scalar_lea.vmem %s0, %s41
    %s43 = sadd.s32 0, 0
    %p44 = scmp.lt.s32.totalorder %s43, 0
    %s45 = scalar_select %p44, %s43, 0
    %s46 = scalar_lea.vmem %s5, %s45
    %s47 = sadd.s32 0, 0
    %s48 = smul.u32 16, %s47
    %p49 = scmp.lt.s32.totalorder %s48, 15
    %s50 = scalar_select %p49, %s48, 15
    %s51 = smul.addr %s50, 4
    %s52 = scalar_lea.vmem %s0, %s51
    %s53 = sadd.s32 0, 0
    %s54 = smul.u32 16, %s53
    %s55 = sadd.s32 0, 0
    %p56 = scmp.lt.s32.totalorder %s55, 0
    %s57 = scalar_select %p56, %s55, 0
    %s58 = scalar_lea.vmem %s5, %s57
    %s59 = sadd.s32 0, 0
    %p61 = scmp.eq.s32.totalorder 0, 0
    // Predicated region
    $region26: #{tpu_custom_call.1} parent=1 // pred_check
      %p62 = pneg %p61
    $region27: #{tpu_custom_call.1} parent=1 // pred_check_branch
      %64 = sbr.rel (%p62) target = $region29
    $region28: #{tpu_custom_call.1} parent=1 // pred_region
      %65 = vst [vmem:[#allocation2] sm:$0xff] 0.0
    $region29: #{tpu_custom_call.1} parent=1 // pred_fallthru
      _
    %v66 = vld [vmem:[%s52] sm:$0xf]
    %v67 = vld [vmem:[%s52 + $0x4] sm:$0xf]
    %v68 = vld [vmem:[%s52 + $0x8] sm:$0xf]
    %v69 = vld [vmem:[%s52 + $0xc] sm:$0xf]
    %v70 = vld [vmem:[%s52 + $0x10] sm:$0xf]
    %v71 = vld [vmem:[%s52 + $0x14] sm:$0xf]
    %v72 = vld [vmem:[%s52 + $0x18] sm:$0xf]
    %v73 = vld [vmem:[%s52 + $0x1c] sm:$0xf]
    %v74 = vld [vmem:[%s52 + $0x20] sm:$0xf]
    %v75 = vld [vmem:[%s52 + $0x24] sm:$0xf]
    %v76 = vld [vmem:[%s52 + $0x28] sm:$0xf]
    %v77 = vld [vmem:[%s52 + $0x2c] sm:$0xf]
    %v78 = vld [vmem:[%s52 + $0x30] sm:$0xf]
    %v79 = vld [vmem:[%s52 + $0x34] sm:$0xf]
    %v80 = vld [vmem:[%s52 + $0x38] sm:$0xf]
    %v81 = vld [vmem:[%s52 + $0x3c] sm:$0xf]
    %v82 = vld [vmem:[%s1] sm:$0xf]
    %v83 = vld [vmem:[%s1 + $0x4] sm:$0xf]
    %v84 = vld [vmem:[%s2] sm:$0x1]
    %v86 = vperm.slane %v84, 0
    %v104 = vunpack.c.l.b16 %v66
    %v105 = vunpack.c.l.b16 %v67
    %v106 = vunpack.c.l.b16 %v68
    %v107 = vunpack.c.l.b16 %v69
    %v108 = vunpack.c.l.b16 %v70
    %v109 = vunpack.c.l.b16 %v71
    %v110 = vunpack.c.l.b16 %v72
    %v111 = vunpack.c.l.b16 %v73
    %v112 = vunpack.c.l.b16 %v74
    %v113 = vunpack.c.l.b16 %v75
    %v114 = vunpack.c.l.b16 %v76
    %v115 = vunpack.c.l.b16 %v77
    %v116 = vunpack.c.l.b16 %v78
    %v117 = vunpack.c.l.b16 %v79
    %v118 = vunpack.c.l.b16 %v80
    %v119 = vunpack.c.l.b16 %v81
    %v120 = vpack.c.b16 %v105, %v104
    %v121 = vpack.c.b16 %v107, %v106
    %v122 = vpack.c.b16 %v109, %v108
    %v123 = vpack.c.b16 %v111, %v110
    %v124 = vpack.c.b16 %v113, %v112
    %v125 = vpack.c.b16 %v115, %v114
    %v126 = vpack.c.b16 %v117, %v116
    %v127 = vpack.c.b16 %v119, %v118
    %v130 = vunpack.c.l.b16 %v82
    %v131 = vunpack.c.l.b16 %v83
    %v132 = vpack.c.b16 %v131, %v130
    %vm134 = vcmask 130048
    %v136 = vsel %vm134, %v120, 0
    %v139 = vsel %vm134, %v121, 0
    %v142 = vsel %vm134, %v122, 0
    %v145 = vsel %vm134, %v123, 0
    %v148 = vsel %vm134, %v124, 0
    %v151 = vsel %vm134, %v125, 0
    %v154 = vsel %vm134, %v126, 0
    %v157 = vsel %vm134, %v127, 0
    %159 = vmatpush.bf16.msra.mxu0 0
    %160 = vmatpush.bf16.msra.mxu0 0
    %161 = vmatpush.bf16.msra.mxu0 0
    %162 = vmatpush.bf16.msra.mxu0 0
    %163 = vmatpush.bf16.msra.mxu0 0
    %164 = vmatpush.bf16.msra.mxu0 0
    %165 = vmatpush.bf16.msra.mxu0 0
    %166 = vmatpush.bf16.msra.mxu0 %v132
    %167 = vmatmul.bf16.gmra.mxu0 %v136
    %v168 = vpop.f32.mrf.mxu0
    %v169 = vadd.f32 %v86, %v168
    %v170 = vpop.f32.mrf.mxu0
    %v171 = vadd.f32 %v86, %v170
    %172 = vmatmul.bf16.gmra.mxu0 %v139
    %v173 = vpop.f32.mrf.mxu0
    %v174 = vadd.f32 %v86, %v173
    %v175 = vpop.f32.mrf.mxu0
    %v176 = vadd.f32 %v86, %v175
    %177 = vmatmul.bf16.gmra.mxu0 %v142
    %v178 = vpop.f32.mrf.mxu0
    %v179 = vadd.f32 %v86, %v178
    %v180 = vpop.f32.mrf.mxu0
    %v181 = vadd.f32 %v86, %v180
    %182 = vmatmul.bf16.gmra.mxu0 %v145
    %v183 = vpop.f32.mrf.mxu0
    %v184 = vadd.f32 %v86, %v183
    %v185 = vpop.f32.mrf.mxu0
    %v186 = vadd.f32 %v86, %v185
    %187 = vmatmul.bf16.gmra.mxu0 %v148
    %v188 = vpop.f32.mrf.mxu0
    %v189 = vadd.f32 %v86, %v188
    %v190 = vpop.f32.mrf.mxu0
    %v191 = vadd.f32 %v86, %v190
    %192 = vmatmul.bf16.gmra.mxu0 %v151
    %v193 = vpop.f32.mrf.mxu0
    %v194 = vadd.f32 %v86, %v193
    %v195 = vpop.f32.mrf.mxu0
    %v196 = vadd.f32 %v86, %v195
    %197 = vmatmul.bf16.gmra.mxu0 %v154
    %v198 = vpop.f32.mrf.mxu0
    %v199 = vadd.f32 %v86, %v198
    %v200 = vpop.f32.mrf.mxu0
    %v201 = vadd.f32 %v86, %v200
    %202 = vmatmul.bf16.gmra.mxu0 %v157
    %v203 = vpop.f32.mrf.mxu0
    %v204 = vadd.f32 %v86, %v203
    %v205 = vpop.f32.mrf.mxu0
    %v206 = vadd.f32 %v86, %v205
    %207 = vdwg.mxu0
    %v208 = vmax.f32 %v169, 0.0
    %v209 = vmax.f32 %v171, 0.0
    %v210 = vmax.f32 %v174, 0.0
    %v211 = vmax.f32 %v176, 0.0
    %v212 = vmax.f32 %v179, 0.0
    %v213 = vmax.f32 %v181, 0.0
    %v214 = vmax.f32 %v184, 0.0
    %v215 = vmax.f32 %v186, 0.0
    %v216 = vmax.f32 %v189, 0.0
    %v217 = vmax.f32 %v191, 0.0
    %v218 = vmax.f32 %v194, 0.0
    %v219 = vmax.f32 %v196, 0.0
    %v220 = vmax.f32 %v199, 0.0
    %v221 = vmax.f32 %v201, 0.0
    %v222 = vmax.f32 %v204, 0.0
    %v223 = vmax.f32 %v206, 0.0
    %v224 = vpack.c.bf16 %v209, %v208
    %v225 = vpack.c.bf16 %v211, %v210
    %v226 = vpack.c.bf16 %v213, %v212
    %v227 = vpack.c.bf16 %v215, %v214
    %v228 = vpack.c.bf16 %v217, %v216
    %v229 = vpack.c.bf16 %v219, %v218
    %v230 = vpack.c.bf16 %v221, %v220
    %v231 = vpack.c.bf16 %v223, %v222
    %v232 = vld [vmem:[%s3] sm:$0xf]
    %v233 = vld [vmem:[%s3 + $0x4] sm:$0xf]
    %v234 = vld [vmem:[%s3 + $0x8] sm:$0xf]
    %v235 = vld [vmem:[%s3 + $0xc] sm:$0xf]
    %v236 = vld [vmem:[%s3 + $0x10] sm:$0xf]
    %v237 = vld [vmem:[%s3 + $0x14] sm:$0xf]
    %v238 = vld [vmem:[%s3 + $0x18] sm:$0xf]
    %v239 = vld [vmem:[%s3 + $0x1c] sm:$0xf]
    %v240 = vld [vmem:[%s3 + $0x20] sm:$0xf]
    %v241 = vld [vmem:[%s3 + $0x24] sm:$0xf]
    %v242 = vld [vmem:[%s3 + $0x28] sm:$0xf]
    %v243 = vld [vmem:[%s3 + $0x2c] sm:$0xf]
    %v244 = vld [vmem:[%s3 + $0x30] sm:$0xf]
    %v245 = vld [vmem:[%s3 + $0x34] sm:$0xf]
    %v246 = vld [vmem:[%s3 + $0x38] sm:$0xf]
    %v247 = vld [vmem:[%s3 + $0x3c] sm:$0xf]
    %v248 = vld [vmem:[%s4] sm:$0x1]
    %v250 = vperm.slane %v248, 0
    %v268 = vunpack.c.l.b16 %v232
    %v269 = vunpack.c.l.b16 %v233
    %v270 = vunpack.c.l.b16 %v234
    %v271 = vunpack.c.l.b16 %v235
    %v272 = vunpack.c.l.b16 %v236
    %v273 = vunpack.c.l.b16 %v237
    %v274 = vunpack.c.l.b16 %v238
    %v275 = vunpack.c.l.b16 %v239
    %v276 = vunpack.c.l.b16 %v240
    %v277 = vunpack.c.l.b16 %v241
    %v278 = vunpack.c.l.b16 %v242
    %v279 = vunpack.c.l.b16 %v243
    %v280 = vunpack.c.l.b16 %v244
    %v281 = vunpack.c.l.b16 %v245
    %v282 = vunpack.c.l.b16 %v246
    %v283 = vunpack.c.l.b16 %v247
    %v284 = vpack.c.b16 %v269, %v268
    %v285 = vpack.c.b16 %v271, %v270
    %v286 = vpack.c.b16 %v273, %v272
    %v287 = vpack.c.b16 %v275, %v274
    %v288 = vpack.c.b16 %v277, %v276
    %v289 = vpack.c.b16 %v279, %v278
    %v290 = vpack.c.b16 %v281, %v280
    %v291 = vpack.c.b16 %v283, %v282
    %300 = vmatpush.bf16.msra.mxu0 %v291
    %301 = vmatpush.bf16.msra.mxu0 %v290
    %302 = vmatpush.bf16.msra.mxu0 %v289
    %303 = vmatpush.bf16.msra.mxu0 %v288
    %304 = vmatpush.bf16.msra.mxu0 %v287
    %305 = vmatpush.bf16.msra.mxu0 %v286
    %306 = vmatpush.bf16.msra.mxu0 %v285
    %307 = vmatpush.bf16.msra.mxu0 %v284
    %308 = vmatmul.bf16.gmra.mxu0 %v224
    %v309 = vpop.f32.mrf.mxu0
    %v310 = vadd.f32 %v250, %v309
    %v311 = vpop.f32.mrf.mxu0
    %v312 = vadd.f32 %v250, %v311
    %313 = vmatmul.bf16.gmra.mxu0 %v225
    %v314 = vpop.f32.mrf.mxu0
    %v315 = vadd.f32 %v250, %v314
    %v316 = vpop.f32.mrf.mxu0
    %v317 = vadd.f32 %v250, %v316
    %318 = vmatmul.bf16.gmra.mxu0 %v226
    %v319 = vpop.f32.mrf.mxu0
    %v320 = vadd.f32 %v250, %v319
    %v321 = vpop.f32.mrf.mxu0
    %v322 = vadd.f32 %v250, %v321
    %323 = vmatmul.bf16.gmra.mxu0 %v227
    %v324 = vpop.f32.mrf.mxu0
    %v325 = vadd.f32 %v250, %v324
    %v326 = vpop.f32.mrf.mxu0
    %v327 = vadd.f32 %v250, %v326
    %328 = vmatmul.bf16.gmra.mxu0 %v228
    %v329 = vpop.f32.mrf.mxu0
    %v330 = vadd.f32 %v250, %v329
    %v331 = vpop.f32.mrf.mxu0
    %v332 = vadd.f32 %v250, %v331
    %333 = vmatmul.bf16.gmra.mxu0 %v229
    %v334 = vpop.f32.mrf.mxu0
    %v335 = vadd.f32 %v250, %v334
    %v336 = vpop.f32.mrf.mxu0
    %v337 = vadd.f32 %v250, %v336
    %338 = vmatmul.bf16.gmra.mxu0 %v230
    %v339 = vpop.f32.mrf.mxu0
    %v340 = vadd.f32 %v250, %v339
    %v341 = vpop.f32.mrf.mxu0
    %v342 = vadd.f32 %v250, %v341
    %343 = vmatmul.bf16.gmra.mxu0 %v231
    %v344 = vpop.f32.mrf.mxu0
    %v345 = vadd.f32 %v250, %v344
    %v346 = vpop.f32.mrf.mxu0
    %v347 = vadd.f32 %v250, %v346
    %348 = vdwg.mxu0
    %v349 = vmax.f32 %v310, 0.0
    %v350 = vmax.f32 %v312, 0.0
    %v351 = vmax.f32 %v315, 0.0
    %v352 = vmax.f32 %v317, 0.0
    %v353 = vmax.f32 %v320, 0.0
    %v354 = vmax.f32 %v322, 0.0
    %v355 = vmax.f32 %v325, 0.0
    %v356 = vmax.f32 %v327, 0.0
    %v357 = vmax.f32 %v330, 0.0
    %v358 = vmax.f32 %v332, 0.0
    %v359 = vmax.f32 %v335, 0.0
    %v360 = vmax.f32 %v337, 0.0
    %v361 = vmax.f32 %v340, 0.0
    %v362 = vmax.f32 %v342, 0.0
    %v363 = vmax.f32 %v345, 0.0
    %v364 = vmax.f32 %v347, 0.0
    %v365 = vlaneseq
    %v366 = vshrl.u32 %v365, 7
    %v367 = vld [vmem:[%s58] sm:$0x1]
    %v368 = vperm.slane %v367, 0
    %vm369 = vcmp.eq.s32.totalorder %v368, %v366
    %v370 = vsel %vm369, 1, 0
    %v371 = vcvt.s32.f32 %v370
    %v372 = vpack.c.bf16 %v371, %v371
    %v373 = vld [vmem:[#allocation2] sm:$0xff]
    %v374 = vpack.c.bf16 %v350, %v349
    %v375 = vpack.c.bf16 %v352, %v351
    %v376 = vpack.c.bf16 %v354, %v353
    %v377 = vpack.c.bf16 %v356, %v355
    %v378 = vpack.c.bf16 %v358, %v357
    %v379 = vpack.c.bf16 %v360, %v359
    %v380 = vpack.c.bf16 %v362, %v361
    %v381 = vpack.c.bf16 %v364, %v363
    %382 = vmatpush.bf16.msra.mxu0 %v381
    %383 = vmatpush.bf16.msra.mxu0 %v380
    %384 = vmatpush.bf16.msra.mxu0 %v379
    %385 = vmatpush.bf16.msra.mxu0 %v378
    %386 = vmatpush.bf16.msra.mxu0 %v377
    %387 = vmatpush.bf16.msra.mxu0 %v376
    %388 = vmatpush.bf16.msra.mxu0 %v375
    %389 = vmatpush.bf16.msra.mxu0 %v374
    %390 = vmatmul.bf16.gmra.mxu0 %v372
    %v391 = vpop.f32.mrf.mxu0
    %v392 = vadd.f32 0.0, %v391
    %v393 = vpop.f32.mrf.mxu0
    %394 = vdwg.mxu0
    %v395 = vadd.f32 %v373, %v392
    %396 = vst [vmem:[#allocation2] sm:$0xff] %v395
    // Predicated region
    $region30: #{tpu_custom_call.1} parent=1 // pred_check
      _
    $region31: #{tpu_custom_call.1} parent=1 // pred_check_branch
      %398 = sbr.rel (0) target = $region33
    $region32: #{tpu_custom_call.1} parent=1 // pred_region
      %400 = vsyncadd [#allocation3], 0
      %s402 = sshll.u32 [#allocation2], 4
      %s403 = int_to_ptr.vmem [resolvable:$true] %s402
      %s404 = sshll.u32 %s6, 4
      %s405 = int_to_ptr.hbm [resolvable:$true] %s404
      %407 = dma.vmem_to_hbm [thread:$0]  %s403, 128, %s405, [#allocation3]
    $region33: #{tpu_custom_call.1} parent=1 // pred_fallthru
      _
    // Predicated region
    $region34: #{tpu_custom_call.1} parent=1 // pred_check
      _
    $region35: #{tpu_custom_call.1} parent=1 // pred_check_branch
      %409 = sbr.rel (0) target = $region37
    $region36: #{tpu_custom_call.1} parent=1 // pred_region
      %411 = dma.done [#allocation3], 128
    $region37: #{tpu_custom_call.1} parent=1 // pred_fallthru
      _
    %412 = vsyncpa [#allocation3], 1

</llo_original>
